<compile_context>
chip_gen: v6e
topology: v6e:2x2x1
jax: 0.10.0
libtpu: 0.0.40
codegen_flags: <defaults>
</compile_context>

<pallas_src>
import jax
import jax.numpy as jnp
from jax.experimental import pallas as pl
from jax.experimental.pallas import tpu as pltpu

C1 = 16          # number of DFL bins (conv in-channels)
MAX_TA = 8192    # max anchor tile width (lanes); 2 MiB f32 input block


def dfl_kernel(x_ref, o_ref):
    # x_ref: (1, 4, C1, ta)   o_ref: (1, 4, ta)
    x = x_ref[0].astype(jnp.float32)                     # (4, C1, ta)
    # Numerically-stable softmax numerator over the C1 bins (sublane reduce).
    m = jnp.max(x, axis=1, keepdims=True)                # (4, 1, ta)
    e = jnp.exp(x - m)                                   # (4, C1, ta)  (EUP)
    # Bin weights 0..C1-1 generated in-kernel (no DMA'd parameter).
    w = jax.lax.broadcasted_iota(jnp.int32, x.shape, 1).astype(jnp.float32)
    se = jnp.sum(e, axis=1)                              # (4, ta) softmax denom
    sw = jnp.sum(e * w, axis=1)                          # (4, ta) weighted numer
    # Deferred normalization: one small (4, ta) multiply, exact reciprocal
    # (approx=True's ~2^-12 rel. error would be visible on values up to c1-1).
    o_ref[0] = (sw * pl.reciprocal(se, approx=False)).astype(o_ref.dtype)


def _cdiv(a, b):
    return -(-a // b)


def _round_up(v, m):
    return _cdiv(v, m) * m


def _anchor_tile(a, b, max_tile):
    """Pick the anchor (lane) tile: large, lane-aligned, load-balanced."""
    if a <= 128:
        return a                           # single full-extent anchor block
    chunks = _cdiv(a, max_tile)
    if b == 1 and chunks < 2:
        chunks = 2                         # give v7x's 2nd TensorCore work
    # Roughly-equal chunks, rounded up to a 128-lane multiple (<= max_tile).
    return min(_round_up(_cdiv(a, chunks), 128), max_tile)


def dfl_forward(x, c1=C1, max_tile=MAX_TA):
    """x: (B, 4*c1, A) float32/bf16 -> (B, 4, A) in x.dtype."""
    b, ch, a = x.shape
    assert ch == 4 * c1, "channel dim must be 4*c1"

    # Same channel split as torch's x.view(b, 4, c1, a); metadata-only reshape.
    xr = x.reshape(b, 4, c1, a)

    ta = _anchor_tile(a, b, max_tile)
    grid = (b, _cdiv(a, ta))               # ragged anchor tail handled by Pallas

    return pl.pallas_call(
        dfl_kernel,
        out_shape=jax.ShapeDtypeStruct((b, 4, a), x.dtype),
        grid_spec=pltpu.PrefetchScalarGridSpec(
            num_scalar_prefetch=0,
            grid=grid,
            in_specs=[pl.BlockSpec((1, 4, c1, ta), lambda i, j: (i, 0, 0, j))],
            out_specs=pl.BlockSpec((1, 4, ta), lambda i, j: (i, 0, j)),
        ),
        compiler_params=pltpu.CompilerParams(
            dimension_semantics=("parallel", "parallel")),
    )(xr)


def dfl_reference(x, c1=C1):
    b, _, a = x.shape
    xr = x.reshape(b, 4, c1, a).astype(jnp.float32)
    p = jax.nn.softmax(xr, axis=2)
    w = jnp.arange(c1, dtype=jnp.float32).reshape(1, 1, c1, 1)
    return jnp.sum(p * w, axis=2).astype(x.dtype)


if __name__ == "__main__":
    key = jax.random.PRNGKey(0)
    # (B, A): lane-aligned full-extent path, ragged split path (B == 1 forces
    # two balanced chunks), and ragged multi-tile (cdiv + boundary masking).
    cases = [(2, 256), (1, 333), (1, 2248)]
    for i, (B, A) in enumerate(cases):
        k = jax.random.fold_in(key, i)
        x = jax.random.normal(k, (B, 4 * C1, A), dtype=jnp.float32)
        out = jax.block_until_ready(dfl_forward(x))
        ref = dfl_reference(x)
        assert out.shape == (B, 4, A), out.shape
        err = float(jnp.max(jnp.abs(out - ref)))
        assert err < 1e-4, err
    print("KERNEL_OK")
</pallas_src>

<mosaic_0001>
module attributes {stable_mosaic.version = 11 : i64} {
  func.func @dfl_kernel(%arg0: i32, %arg1: i32, %arg2: memref<1x4x16x256xf32, #tpu.memory_space<vmem>>, %arg3: memref<1x4x256xf32, #tpu.memory_space<vmem>>) attributes {dimension_semantics = [#tpu.dimension_semantics<parallel>, #tpu.dimension_semantics<parallel>], iteration_bounds = array<i64: 2, 1>, scalar_prefetch = 0 : i64, scratch_operands = 0 : i64, tpu.core_type = #tpu.core_type<tc>, window_params = [{transform_indices = @transform_0, window_bounds = array<i64: 1, 4, 16, 256>}, {transform_indices = @transform_1, window_bounds = array<i64: 1, 4, 256>}]} {
    %c0 = arith.constant 0 : index
    %c0_0 = arith.constant 0 : index
    %c0_1 = arith.constant 0 : index
    %c0_2 = arith.constant 0 : index
    %0 = vector.load %arg2[%c0, %c0_0, %c0_1, %c0_2] : memref<1x4x16x256xf32, #tpu.memory_space<vmem>>, vector<1x4x16x256xf32>
    %1 = vector.shape_cast %0 : vector<1x4x16x256xf32> to vector<4x16x256xf32>
    %cst = arith.constant dense<0xFF800000> : vector<4x256xf32>
    %2 = vector.multi_reduction <maximumf>, %1, %cst [1] : vector<4x16x256xf32> to vector<4x256xf32>
    %3 = vector.shape_cast %2 : vector<4x256xf32> to vector<4x1x256xf32>
    %4 = vector.broadcast %3 : vector<4x1x256xf32> to vector<4x16x256xf32>
    %5 = arith.subf %1, %4 : vector<4x16x256xf32>
    %6 = math.exp %5 : vector<4x16x256xf32>
    %7 = tpu.iota {dimensions = array<i32: 1>} : vector<4x16x256xi32>
    %8 = arith.sitofp %7 : vector<4x16x256xi32> to vector<4x16x256xf32>
    %cst_3 = arith.constant dense<0.000000e+00> : vector<4x256xf32>
    %9 = vector.multi_reduction <add>, %6, %cst_3 [1] : vector<4x16x256xf32> to vector<4x256xf32>
    %10 = arith.mulf %6, %8 : vector<4x16x256xf32>
    %cst_4 = arith.constant dense<0.000000e+00> : vector<4x256xf32>
    %11 = vector.multi_reduction <add>, %10, %cst_4 [1] : vector<4x16x256xf32> to vector<4x256xf32>
    %12 = tpu.reciprocal %9 : vector<4x256xf32> -> vector<4x256xf32>
    %13 = arith.mulf %11, %12 : vector<4x256xf32>
    %c0_5 = arith.constant 0 : index
    %c0_6 = arith.constant 0 : index
    %c0_7 = arith.constant 0 : index
    %14 = vector.load %arg3[%c0_5, %c0_6, %c0_7] : memref<1x4x256xf32, #tpu.memory_space<vmem>>, vector<1x4x256xf32>
    %15 = vector.shape_cast %14 : vector<1x4x256xf32> to vector<4x256xf32>
    %16 = vector.shape_cast %13 : vector<4x256xf32> to vector<1x4x256xf32>
    tpu.vector_store %arg3[%c0_5, %c0_6, %c0_7], %16 {strides = array<i32>} : memref<1x4x256xf32, #tpu.memory_space<vmem>>, vector<1x4x256xf32>,
    return
  }
  func.func @transform_0(%arg0: i32, %arg1: i32) -> (i32, i32, i32, i32) {
    %c0_i32 = arith.constant 0 : i32
    %c0_i32_0 = arith.constant 0 : i32
    %c0_i32_1 = arith.constant 0 : i32
    return %arg0, %c0_i32, %c0_i32_0, %arg1 : i32, i32, i32, i32
  }
  func.func @transform_1(%arg0: i32, %arg1: i32) -> (i32, i32, i32) {
    %c0_i32 = arith.constant 0 : i32
    %c0_i32_0 = arith.constant 0 : i32
    return %arg0, %c0_i32, %arg1 : i32, i32, i32
  }
}

</mosaic_0001>

<llo_original>
// kernel: tpu_custom_call.1
$region0: #{tpu_custom_call.1}
  #allocation0 [shape = 'u32[]', space=smem, size = 0x4, offset = 0x4, fixed_abs, tag = 'smem constant byte address 0x4 - core index']
  #allocation1 [shape = 'u32[144,128]{1,0:T(1,128)}', space=vmem, size = 0x12000, scoped, tag = 'internal scratch']
  %s0 = inlined_call_operand.hbm [shape: f32[2,4,16,256], index: 0, kind: input, shape index: {}]
  %s1 = inlined_call_operand.hbm [shape: f32[2,4,256], index: 1, kind: output, shape index: {}]
  %s2 = sld [smem:[#allocation0]]
  $region41: #{tpu_custom_call.1} parent=0
    _
  %s4 = ssub.s32 1, %s2
  %s5 = scalar_select 0, %s4, %s2
  $region1: #{tpu_custom_call.1} parent=0
    #allocation2 [shape = 'u8[131072]{0}', space=vmem, size = 0x20000, scoped, tag = 'input window, operand 0']
    #allocation3 [shape = 's32[2]{0}', space=sflag, size = 0x8, scoped, tag = 'scoped memory for tpu_custom_call.1']
    #allocation4 [shape = 's32[2]{0}', space=sflag, size = 0x8, scoped, tag = 'scoped memory for tpu_custom_call.1']
    #allocation5 [shape = 'u8[8192]{0}', space=vmem, size = 0x2000, scoped, tag = 'output window, operand 0']
    %6 = vsyncpa [#allocation3], 0
    %s7 = scalar_lea.sflag [#allocation3], 1
    %8 = vsyncpa %s7, 0
    %9 = vsyncpa [#allocation4], 0
    %s10 = scalar_lea.sflag [#allocation4], 1
    %11 = vsyncpa %s10, 0
    loop: start=0, step=1, limit=4
    $region2: #{tpu_custom_call.1} parent=1 // loop_pre_header
      _
    $region3: #{tpu_custom_call.1} parent=1 // loop_header
      %s13 = sphi 0, %s17
      %p14 = scmp.ge.s32.totalorder %s13, 4
      %s20 = sphi 0, %s32
      %s21 = sphi 0, %s28
      %s22 = sphi 0, %s20
      %s23 = sphi 0, %s21
      %s24 = sphi 0, %s22
      %s25 = sphi 0, %s23
      %s37 = sphi 0, %s39
      %s40 = sphi 0, %s37
      %s41 = sphi 0, %s40
      %s57 = sphi 0, %s41
      %s65 = sphi 0, %s67
      %s68 = sphi 0, %s65
      %s69 = sphi 0, %s68
      %s85 = sphi 0, %s69
    $region4: #{tpu_custom_call.1} parent=1 // loop_header_branch
      %16 = sbr.rel (%p14) target = $region8
    $region5: #{tpu_custom_call.1} parent=1 // loop_body
      %s18 = ssub.s32 %s13, 1
      %s19 = ssub.s32 %s13, 2
      %s26 = sadd.s32 1, %s21
      %p27 = scmp.ge.s32.totalorder %s26, 1
      %s28 = scalar_select %p27, 0, %s26
      %s29 = sadd.s32 1, %s20
      %s30 = scalar_select %p27, %s29, %s20
      %p31 = scmp.ge.s32.totalorder %s30, 2
      %s32 = scalar_select %p31, 0, %s30
      %s33 = ssub.s32 %s20, %s32
      %s34 = ssub.s32 %s21, %s28
      %s35 = sor.u32 %s33, %s34
      %p36 = scmp.eq.s32.totalorder %s35, 0
      %s38 = sadd.s32 %s37, 1
      %s39 = scalar_select %p36, %s37, %s38
      %p42 = pneg %p36
      %p43 = scmp.eq.s32.totalorder %s13, 1
      %p44 = por %p42, %p43
      %p45 = scmp.ne.s32.totalorder %s37, %s40
      %p46 = scmp.eq.s32.totalorder %s13, 0
      %p47 = por %p45, %p46
      %p48 = scmp.ne.s32.totalorder %s37, %s40
      %p49 = scmp.eq.s32.totalorder %s18, 1
      %p50 = por %p48, %p49
      %p51 = scmp.ne.s32.totalorder %s40, %s41
      %p52 = scmp.eq.s32.totalorder %s18, 0
      %p53 = por %p51, %p52
      %p54 = scmp.ne.s32.totalorder %s40, %s41
      %p55 = scmp.eq.s32.totalorder %s19, 1
      %p56 = por %p54, %p55
      %p58 = scmp.ne.s32.totalorder %s41, %s57
      %p59 = scmp.eq.s32.totalorder %s19, 0
      %p60 = por %p58, %p59
      %s61 = ssub.s32 %s20, %s32
      %s62 = ssub.s32 %s21, %s28
      %s63 = sor.u32 %s61, %s62
      %p64 = scmp.eq.s32.totalorder %s63, 0
      %s66 = sadd.s32 %s65, 1
      %s67 = scalar_select %p64, %s65, %s66
      %p70 = pneg %p64
      %p71 = scmp.eq.s32.totalorder %s13, 1
      %p72 = por %p70, %p71
      %p73 = scmp.ne.s32.totalorder %s65, %s68
      %p74 = scmp.eq.s32.totalorder %s13, 0
      %p75 = por %p73, %p74
      %p76 = scmp.ne.s32.totalorder %s65, %s68
      %p77 = scmp.eq.s32.totalorder %s18, 1
      %p78 = por %p76, %p77
      %p79 = scmp.ne.s32.totalorder %s68, %s69
      %p80 = scmp.eq.s32.totalorder %s18, 0
      %p81 = por %p79, %p80
      %p82 = scmp.ne.s32.totalorder %s68, %s69
      %p83 = scmp.eq.s32.totalorder %s19, 1
      %p84 = por %p82, %p83
      %p86 = scmp.ne.s32.totalorder %s69, %s85
      %p87 = scmp.eq.s32.totalorder %s19, 0
      %p88 = por %p86, %p87
      %p89 = scmp.le.s32.totalorder 1, %s13
      %p90 = scmp.lt.s32.totalorder %s13, 3
      %p91 = pnand %p89, %p90
      %p92 = pneg %p91
      // Predicated region
      $region9: #{tpu_custom_call.1} parent=5 // pred_check
        _
      $region10: #{tpu_custom_call.1} parent=5 // pred_check_branch
        %94 = sbr.rel (%p91) target = $region12
      $region11: #{tpu_custom_call.1} parent=5 // pred_region
        %s95 = ssub.s32 %s13, 1
      $region12: #{tpu_custom_call.1} parent=5 // pred_fallthru
        _
      %p96 = scmp.lt.s32.totalorder %s13, 2
      // Predicated region
      $region13: #{tpu_custom_call.1} parent=5 // pred_check
        %p97 = pneg %p96
      $region14: #{tpu_custom_call.1} parent=5 // pred_check_branch
        %99 = sbr.rel (%p97) target = $region16
      $region15: #{tpu_custom_call.1} parent=5 // pred_region
        // Predicated region
        $region17: #{tpu_custom_call.1} parent=15 // pred_check
          %p100 = pneg %p47
        $region18: #{tpu_custom_call.1} parent=15 // pred_check_branch
          %102 = sbr.rel (%p100) target = $region20
        $region19: #{tpu_custom_call.1} parent=15 // pred_region
          %s103 = sand.u32 %s37, 1
          %s104 = scalar_lea.sflag [#allocation3], %s103
          %s105 = sand.u32 %s37, 1
          %s106 = smul.addr %s105, 128
          %s107 = scalar_lea.vmem [#allocation2], %s106
          %s108 = smul.u32 2, %s21
          %s110 = ssub.s32 2048, 2048
          %111 = vsyncadd %s104, %s110
          %s112 = smul.addr %s20, 16
          %s113 = sadd.s32 %s108, %s112
          %s114 = smul.addr %s113, 128
          %s115 = scalar_lea.hbm %s0, %s114
          %s116 = sshll.u32 %s107, 4
          %s117 = int_to_ptr.vmem [resolvable:$true] %s116
          %122 = dma.hbm_to_vmem [thread:$0]  %s115, 2048, %s117, %s104, 256, 256, 16
        $region20: #{tpu_custom_call.1} parent=15 // pred_fallthru
          _
      $region16: #{tpu_custom_call.1} parent=5 // pred_fallthru
        _
      %p123 = scmp.le.s32.totalorder 1, %s13
      %p124 = scmp.lt.s32.totalorder %s13, 3
      %p125 = pnand %p123, %p124
      %p126 = pneg %p125
      // Predicated region
      $region21: #{tpu_custom_call.1} parent=5 // pred_check
        _
      $region22: #{tpu_custom_call.1} parent=5 // pred_check_branch
        %128 = sbr.rel (%p125) target = $region24
      $region23: #{tpu_custom_call.1} parent=5 // pred_region
        %s129 = ssub.s32 %s13, 1
        %s130 = sand.u32 %s40, 1
        %s131 = scalar_lea.sflag [#allocation3], %s130
        %s132 = sand.u32 %s40, 1
        %s133 = smul.addr %s132, 128
        %s134 = scalar_lea.vmem [#allocation2], %s133
        // Predicated region
        $region25: #{tpu_custom_call.1} parent=23 // pred_check
          %p135 = pneg %p53
        $region26: #{tpu_custom_call.1} parent=23 // pred_check_branch
          %137 = sbr.rel (%p135) target = $region28
        $region27: #{tpu_custom_call.1} parent=23 // pred_region
          %138 = dma.done %s131, 2048
        $region28: #{tpu_custom_call.1} parent=23 // pred_fallthru
          _
        %s139 = sand.u32 %s40, 1
        %s140 = scalar_lea.sflag [#allocation3], %s139
        %s141 = sand.u32 %s40, 1
        %s142 = smul.addr %s141, 128
        %s143 = scalar_lea.vmem [#allocation2], %s142
        %p144 = pneg %p53
        %p145 = pneg %p50
        %p146 = pneg %p81
        %p147 = pneg %p78
        %s148 = sand.u32 %s68, 1
        %s149 = scalar_lea.sflag [#allocation4], %s148
        %s150 = sand.u32 %s68, 1
        %s151 = smul.addr %s150, 8
        %s152 = scalar_lea.vmem [#allocation5], %s151
        %s153 = smul.u32 2, %s23
        %s154 = smul.u32 2, %s23
        %v155 = vld [vmem:[%s134] sm:$0xff]
        %v156 = vld [vmem:[%s134 + $0x8] sm:$0xff]
        %v157 = vld [vmem:[%s134 + $0x10] sm:$0xff]
        %v158 = vld [vmem:[%s134 + $0x18] sm:$0xff]
        %v159 = vld [vmem:[%s134 + $0x20] sm:$0xff]
        %v160 = vld [vmem:[%s134 + $0x28] sm:$0xff]
        %v161 = vld [vmem:[%s134 + $0x30] sm:$0xff]
        %v162 = vld [vmem:[%s134 + $0x38] sm:$0xff]
        %v163 = vld [vmem:[%s134 + $0x40] sm:$0xff]
        %v164 = vld [vmem:[%s134 + $0x48] sm:$0xff]
        %v165 = vld [vmem:[%s134 + $0x50] sm:$0xff]
        %v166 = vld [vmem:[%s134 + $0x58] sm:$0xff]
        %v167 = vld [vmem:[%s134 + $0x60] sm:$0xff]
        %v168 = vld [vmem:[%s134 + $0x68] sm:$0xff]
        %v169 = vld [vmem:[%s134 + $0x70] sm:$0xff]
        %v170 = vld [vmem:[%s134 + $0x78] sm:$0xff]
        %v171 = vmax.f32 %v155, %v157
        %v172 = vrot.slane %v171, 4
        %v173 = vmax.f32 %v171, %v172
        %v174 = vrot.slane %v173, 2
        %v175 = vmax.f32 %v173, %v174
        %v176 = vrot.slane %v175, 1
        %v177 = vmax.f32 %v175, %v176
        %v178 = vmax.f32 %v156, %v158
        %v179 = vrot.slane %v178, 4
        %v180 = vmax.f32 %v178, %v179
        %v181 = vrot.slane %v180, 2
        %v182 = vmax.f32 %v180, %v181
        %v183 = vrot.slane %v182, 1
        %v184 = vmax.f32 %v182, %v183
        %v185 = vmax.f32 %v159, %v161
        %v186 = vrot.slane %v185, 4
        %v187 = vmax.f32 %v185, %v186
        %v188 = vrot.slane %v187, 2
        %v189 = vmax.f32 %v187, %v188
        %v190 = vrot.slane %v189, 1
        %v191 = vmax.f32 %v189, %v190
        %v192 = vmax.f32 %v160, %v162
        %v193 = vrot.slane %v192, 4
        %v194 = vmax.f32 %v192, %v193
        %v195 = vrot.slane %v194, 2
        %v196 = vmax.f32 %v194, %v195
        %v197 = vrot.slane %v196, 1
        %v198 = vmax.f32 %v196, %v197
        %v199 = vmax.f32 %v163, %v165
        %v200 = vrot.slane %v199, 4
        %v201 = vmax.f32 %v199, %v200
        %v202 = vrot.slane %v201, 2
        %v203 = vmax.f32 %v201, %v202
        %v204 = vrot.slane %v203, 1
        %v205 = vmax.f32 %v203, %v204
        %v206 = vmax.f32 %v164, %v166
        %v207 = vrot.slane %v206, 4
        %v208 = vmax.f32 %v206, %v207
        %v209 = vrot.slane %v208, 2
        %v210 = vmax.f32 %v208, %v209
        %v211 = vrot.slane %v210, 1
        %v212 = vmax.f32 %v210, %v211
        %v213 = vmax.f32 %v167, %v169
        %v214 = vrot.slane %v213, 4
        %v215 = vmax.f32 %v213, %v214
        %v216 = vrot.slane %v215, 2
        %v217 = vmax.f32 %v215, %v216
        %v218 = vrot.slane %v217, 1
        %v219 = vmax.f32 %v217, %v218
        %v220 = vmax.f32 %v168, %v170
        %v221 = vrot.slane %v220, 4
        %v222 = vmax.f32 %v220, %v221
        %v223 = vrot.slane %v222, 2
        %v224 = vmax.f32 %v222, %v223
        %v225 = vrot.slane %v224, 1
        %v226 = vmax.f32 %v224, %v225
        %v227 = vsub.f32 %v155, %v177
        %v228 = vsub.f32 %v156, %v184
        %v229 = vsub.f32 %v157, %v177
        %v230 = vsub.f32 %v158, %v184
        %v231 = vsub.f32 %v159, %v191
        %v232 = vsub.f32 %v160, %v198
        %v233 = vsub.f32 %v161, %v191
        %v234 = vsub.f32 %v162, %v198
        %v235 = vsub.f32 %v163, %v205
        %v236 = vsub.f32 %v164, %v212
        %v237 = vsub.f32 %v165, %v205
        %v238 = vsub.f32 %v166, %v212
        %v239 = vsub.f32 %v167, %v219
        %v240 = vsub.f32 %v168, %v226
        %v241 = vsub.f32 %v169, %v219
        %v242 = vsub.f32 %v170, %v226
        %v243 = vmul.f32 %v227, 1.442695
        %v244 = vpow.pop %v243
        %v245 = vmul.f32 %v228, 1.442695
        %v246 = vpow.pop %v245
        %v247 = vmul.f32 %v229, 1.442695
        %v248 = vpow.pop %v247
        %v249 = vmul.f32 %v230, 1.442695
        %v250 = vpow.pop %v249
        %v251 = vmul.f32 %v231, 1.442695
        %v252 = vpow.pop %v251
        %v253 = vmul.f32 %v232, 1.442695
        %v254 = vpow.pop %v253
        %v255 = vmul.f32 %v233, 1.442695
        %v256 = vpow.pop %v255
        %v257 = vmul.f32 %v234, 1.442695
        %v258 = vpow.pop %v257
        %v259 = vmul.f32 %v235, 1.442695
        %v260 = vpow.pop %v259
        %v261 = vmul.f32 %v236, 1.442695
        %v262 = vpow.pop %v261
        %v263 = vmul.f32 %v237, 1.442695
        %v264 = vpow.pop %v263
        %v265 = vmul.f32 %v238, 1.442695
        %v266 = vpow.pop %v265
        %v267 = vmul.f32 %v239, 1.442695
        %v268 = vpow.pop %v267
        %v269 = vmul.f32 %v240, 1.442695
        %v270 = vpow.pop %v269
        %v271 = vmul.f32 %v241, 1.442695
        %v272 = vpow.pop %v271
        %v273 = vmul.f32 %v242, 1.442695
        %v274 = vpow.pop %v273
        %v275 = vlaneseq
        %v276 = vshrl.u32 %v275, 7
        %v277 = vadd.s32 %v276, 8
        %v278 = vcvt.s32.f32 %v276
        %v279 = vcvt.s32.f32 %v277
        %v280 = vadd.f32 %v244, %v248
        %v281 = vrot.slane %v280, 4
        %v282 = vadd.f32 %v280, %v281
        %v283 = vrot.slane %v282, 2
        %v284 = vadd.f32 %v282, %v283
        %v285 = vrot.slane %v284, 1
        %v286 = vadd.f32 %v284, %v285
        %v287 = vadd.f32 %v246, %v250
        %v288 = vrot.slane %v287, 4
        %v289 = vadd.f32 %v287, %v288
        %v290 = vrot.slane %v289, 2
        %v291 = vadd.f32 %v289, %v290
        %v292 = vrot.slane %v291, 1
        %v293 = vadd.f32 %v291, %v292
        %v294 = vadd.f32 %v252, %v256
        %v295 = vrot.slane %v294, 4
        %v296 = vadd.f32 %v294, %v295
        %v297 = vrot.slane %v296, 2
        %v298 = vadd.f32 %v296, %v297
        %v299 = vrot.slane %v298, 1
        %v300 = vadd.f32 %v298, %v299
        %v301 = vadd.f32 %v254, %v258
        %v302 = vrot.slane %v301, 4
        %v303 = vadd.f32 %v301, %v302
        %v304 = vrot.slane %v303, 2
        %v305 = vadd.f32 %v303, %v304
        %v306 = vrot.slane %v305, 1
        %v307 = vadd.f32 %v305, %v306
        %v308 = vadd.f32 %v260, %v264
        %v309 = vrot.slane %v308, 4
        %v310 = vadd.f32 %v308, %v309
        %v311 = vrot.slane %v310, 2
        %v312 = vadd.f32 %v310, %v311
        %v313 = vrot.slane %v312, 1
        %v314 = vadd.f32 %v312, %v313
        %v315 = vadd.f32 %v262, %v266
        %v316 = vrot.slane %v315, 4
        %v317 = vadd.f32 %v315, %v316
        %v318 = vrot.slane %v317, 2
        %v319 = vadd.f32 %v317, %v318
        %v320 = vrot.slane %v319, 1
        %v321 = vadd.f32 %v319, %v320
        %v322 = vadd.f32 %v268, %v272
        %v323 = vrot.slane %v322, 4
        %v324 = vadd.f32 %v322, %v323
        %v325 = vrot.slane %v324, 2
        %v326 = vadd.f32 %v324, %v325
        %v327 = vrot.slane %v326, 1
        %v328 = vadd.f32 %v326, %v327
        %v329 = vadd.f32 %v270, %v274
        %v330 = vrot.slane %v329, 4
        %v331 = vadd.f32 %v329, %v330
        %v332 = vrot.slane %v331, 2
        %v333 = vadd.f32 %v331, %v332
        %v334 = vrot.slane %v333, 1
        %v335 = vadd.f32 %v333, %v334
        %v336 = vmul.f32 %v244, %v278
        %v337 = vmul.f32 %v246, %v278
        %v338 = vmul.f32 %v248, %v279
        %v339 = vmul.f32 %v250, %v279
        %v340 = vmul.f32 %v252, %v278
        %v341 = vmul.f32 %v254, %v278
        %v342 = vmul.f32 %v256, %v279
        %v343 = vmul.f32 %v258, %v279
        %v344 = vmul.f32 %v260, %v278
        %v345 = vmul.f32 %v262, %v278
        %v346 = vmul.f32 %v264, %v279
        %v347 = vmul.f32 %v266, %v279
        %v348 = vmul.f32 %v268, %v278
        %v349 = vmul.f32 %v270, %v278
        %v350 = vmul.f32 %v272, %v279
        %v351 = vmul.f32 %v274, %v279
        %v352 = vadd.f32 %v336, %v338
        %v353 = vrot.slane %v352, 4
        %v354 = vadd.f32 %v352, %v353
        %v355 = vrot.slane %v354, 2
        %v356 = vadd.f32 %v354, %v355
        %v357 = vrot.slane %v356, 1
        %v358 = vadd.f32 %v356, %v357
        %v359 = vadd.f32 %v337, %v339
        %v360 = vrot.slane %v359, 4
        %v361 = vadd.f32 %v359, %v360
        %v362 = vrot.slane %v361, 2
        %v363 = vadd.f32 %v361, %v362
        %v364 = vrot.slane %v363, 1
        %v365 = vadd.f32 %v363, %v364
        %v366 = vadd.f32 %v340, %v342
        %v367 = vrot.slane %v366, 4
        %v368 = vadd.f32 %v366, %v367
        %v369 = vrot.slane %v368, 2
        %v370 = vadd.f32 %v368, %v369
        %v371 = vrot.slane %v370, 1
        %v372 = vadd.f32 %v370, %v371
        %v373 = vadd.f32 %v341, %v343
        %v374 = vrot.slane %v373, 4
        %v375 = vadd.f32 %v373, %v374
        %v376 = vrot.slane %v375, 2
        %v377 = vadd.f32 %v375, %v376
        %v378 = vrot.slane %v377, 1
        %v379 = vadd.f32 %v377, %v378
        %v380 = vadd.f32 %v344, %v346
        %v381 = vrot.slane %v380, 4
        %v382 = vadd.f32 %v380, %v381
        %v383 = vrot.slane %v382, 2
        %v384 = vadd.f32 %v382, %v383
        %v385 = vrot.slane %v384, 1
        %v386 = vadd.f32 %v384, %v385
        %v387 = vadd.f32 %v345, %v347
        %v388 = vrot.slane %v387, 4
        %v389 = vadd.f32 %v387, %v388
        %v390 = vrot.slane %v389, 2
        %v391 = vadd.f32 %v389, %v390
        %v392 = vrot.slane %v391, 1
        %v393 = vadd.f32 %v391, %v392
        %v394 = vadd.f32 %v348, %v350
        %v395 = vrot.slane %v394, 4
        %v396 = vadd.f32 %v394, %v395
        %v397 = vrot.slane %v396, 2
        %v398 = vadd.f32 %v396, %v397
        %v399 = vrot.slane %v398, 1
        %v400 = vadd.f32 %v398, %v399
        %v401 = vadd.f32 %v349, %v351
        %v402 = vrot.slane %v401, 4
        %v403 = vadd.f32 %v401, %v402
        %v404 = vrot.slane %v403, 2
        %v405 = vadd.f32 %v403, %v404
        %v406 = vrot.slane %v405, 1
        %v407 = vadd.f32 %v405, %v406
        %v408 = vrcp.pop %v286
        %v409 = vrcp.pop %v293
        %v410 = vrcp.pop %v300
        %v411 = vrcp.pop %v307
        %v412 = vrcp.pop %v314
        %v413 = vrcp.pop %v321
        %v414 = vrcp.pop %v328
        %v415 = vrcp.pop %v335
        %v416 = vmul.f32 %v358, %v408
        %v417 = vmul.f32 %v365, %v409
        %v418 = vmul.f32 %v372, %v410
        %v419 = vmul.f32 %v379, %v411
        %v420 = vmul.f32 %v386, %v412
        %v421 = vmul.f32 %v393, %v413
        %v422 = vmul.f32 %v400, %v414
        %v423 = vmul.f32 %v407, %v415
        %v432 = vcombine.low %v416, %v417
        %v433 = vcombine.low %v418, %v419
        %v434 = vcombine.low %v420, %v421
        %v435 = vcombine.low %v422, %v423
        %v436 = vrot.slane %v433, 7
        %vm437 = vcmask 1041409
        %v438 = vsel %vm437, %v436, %v432
        %vm439 = vcmask 1045509
        %v440 = vsel %vm439, %v436, %v438
        %v441 = vrot.slane %v434, 6
        %vm442 = vcmask 1042434
        %v443 = vsel %vm442, %v441, %v440
        %vm444 = vcmask 1046534
        %v445 = vsel %vm444, %v441, %v443
        %v446 = vrot.slane %v435, 5
        %vm447 = vcmask 1043459
        %v448 = vsel %vm447, %v446, %v445
        %vm449 = vcmask 1047559
        %v450 = vsel %vm449, %v446, %v448
        %452 = vst [vmem:[%s152] sm:$0xff] %v450
        %s453 = sand.u32 %s68, 1
        %s454 = scalar_lea.sflag [#allocation4], %s453
        %s455 = sand.u32 %s68, 1
        %s456 = smul.addr %s455, 8
        %s457 = scalar_lea.vmem [#allocation5], %s456
        // Predicated region
        $region29: #{tpu_custom_call.1} parent=23 // pred_check
          %p458 = pneg %p78
        $region30: #{tpu_custom_call.1} parent=23 // pred_check_branch
          %460 = sbr.rel (%p458) target = $region32
        $region31: #{tpu_custom_call.1} parent=23 // pred_region
          %s461 = smul.u32 2, %s23
          %s463 = ssub.s32 128, 128
          %464 = vsyncadd %s454, %s463
          %s465 = smul.addr %s22, 2
          %s466 = sadd.s32 %s461, %s465
          %s467 = smul.addr %s466, 64
          %s468 = scalar_lea.hbm %s1, %s467
          %s470 = sshll.u32 %s457, 4
          %s471 = int_to_ptr.vmem [resolvable:$true] %s470
          %473 = dma.vmem_to_hbm [thread:$0]  %s471, 128, %s468, %s454
        $region32: #{tpu_custom_call.1} parent=23 // pred_fallthru
          _
      $region24: #{tpu_custom_call.1} parent=5 // pred_fallthru
        _
      %p474 = scmp.le.s32.totalorder 2, %s13
      // Predicated region
      $region33: #{tpu_custom_call.1} parent=5 // pred_check
        %p475 = pneg %p474
      $region34: #{tpu_custom_call.1} parent=5 // pred_check_branch
        %477 = sbr.rel (%p475) target = $region36
      $region35: #{tpu_custom_call.1} parent=5 // pred_region
        %s478 = ssub.s32 %s13, 2
        // Predicated region
        $region37: #{tpu_custom_call.1} parent=35 // pred_check
          %p479 = pneg %p84
        $region38: #{tpu_custom_call.1} parent=35 // pred_check_branch
          %481 = sbr.rel (%p479) target = $region40
        $region39: #{tpu_custom_call.1} parent=35 // pred_region
          %s482 = sand.u32 %s69, 1
          %s483 = scalar_lea.sflag [#allocation4], %s482
          %s484 = sand.u32 %s69, 1
          %s485 = smul.addr %s484, 8
          %s486 = scalar_lea.vmem [#allocation5], %s485
          %487 = dma.done %s483, 128
        $region40: #{tpu_custom_call.1} parent=35 // pred_fallthru
          _
      $region36: #{tpu_custom_call.1} parent=5 // pred_fallthru
        _
    $region6: #{tpu_custom_call.1} parent=1 // loop_footer
      %s17 = sadd.s32 1, %s13
    $region7: #{tpu_custom_call.1} parent=1 // loop_footer_branch
      %12 = sbr.rel target = $region3
    $region8: #{tpu_custom_call.1} parent=1 // loop_exit
      _
    %488 = vsyncpa [#allocation3], 1
    %s489 = scalar_lea.sflag [#allocation3], 1
    %490 = vsyncpa %s489, 1
    %491 = vsyncpa [#allocation4], 1
    %s492 = scalar_lea.sflag [#allocation4], 1
    %493 = vsyncpa %s492, 1

</llo_original>
